<compile_context>
chip_gen: v7x
topology: tpu7x:2x2x1
jax: 0.10.0
libtpu: 0.0.40
codegen_flags: <defaults>
</compile_context>

<pallas_src>
import jax
import jax.numpy as jnp
from jax.experimental import pallas as pl
from jax.experimental.pallas import tpu as pltpu


def _intermediate_kernel(x_ref, w_ref, b_ref, o_ref):
    # x_ref: (tm, K) in caller dtype; w_ref: (K, N) bf16 resident; b_ref: (1, N) f32.
    # Cast x to the MXU dtype in-kernel (VPU op on a VMEM tile, no extra HBM pass).
    x = x_ref[...].astype(w_ref.dtype)
    acc = jnp.dot(x, w_ref[...], preferred_element_type=jnp.float32)
    acc = acc + b_ref[...]                                   # bias broadcast (f32)
    o_ref[...] = jnp.maximum(acc, 0.0).astype(o_ref.dtype)   # ReLU, single downcast
    # TODO(synk): fuse the downstream MobileBertOutput (512->128 Linear + residual +
    # LayerNorm) here so the (M, 512) intermediate never leaves VMEM — out of scope for
    # this module's forward, which must return the (B, S, 512) ReLU activations.


def prepare_params(weight_nk, bias_n, *, compute_dtype=jnp.bfloat16):
    """One-time parameter prep (outside the per-call path).

    weight_nk: torch nn.Linear layout (intermediate_size, emb_dim).
    Returns (weight_kn_bf16, bias_1n_f32).
    """
    w_kn = jnp.asarray(weight_nk).T.astype(compute_dtype)      # (K, N), MXU dtype
    b_1n = jnp.asarray(bias_n).reshape(1, -1).astype(jnp.float32)
    return w_kn, b_1n


def _pick_tm(M, block_m):
    align = 16  # bf16 packs 2 rows/sublane: 16-row tiles match the native (16,128) tile
    if M <= 2 * align:
        # Tiny M: a single 16-row-aligned block; splitting is pure overhead.
        return max(align, -(-M // align) * align)
    if M <= block_m:
        # Split into >= 2 blocks so v7x's two TensorCores both get work
        # (dimension_semantics=("parallel",) only helps when num_m >= 2).
        half = (M + 1) // 2
        return -(-half // align) * align
    # M > block_m: prefer a tile that divides M so the jnp.pad branch never triggers.
    for cand in (block_m, block_m // 2, block_m // 4):
        if cand >= 256 and M % cand == 0:
            return cand
    return block_m


def mobilebert_intermediate(hidden_states, weight_kn, bias_1n, *,
                            block_m=1024, out_dtype=None):
    """hidden_states: (B, S, K) f32/bf16; weight_kn: (K, N) (pre-cast, see prepare_params);
    bias_1n: (1, N) f32.  Pass out_dtype=jnp.bfloat16 to halve the HBM writeback."""
    B, S, K = hidden_states.shape
    Kw, N = weight_kn.shape
    assert Kw == K, "weight must be (emb_dim, intermediate_size)"
    if out_dtype is None:
        out_dtype = hidden_states.dtype        # matches the torch module's output dtype
    M = B * S

    x = hidden_states.reshape(M, K)

    tm = _pick_tm(M, block_m)
    num_m = pl.cdiv(M, tm)
    M_pad = num_m * tm
    if M_pad != M:
        x = jnp.pad(x, ((0, M_pad - M), (0, 0)))

    x_bytes = jnp.dtype(x.dtype).itemsize
    w_bytes = jnp.dtype(weight_kn.dtype).itemsize
    out_bytes = jnp.dtype(out_dtype).itemsize

    cost = pl.CostEstimate(
        flops=2 * M_pad * K * N,
        transcendentals=0,
        bytes_accessed=(M_pad * K * x_bytes + K * N * w_bytes + N * 4
                        + M_pad * N * out_bytes),
    )

    # Double-buffered x/out tiles + resident weight/bias. Only raise the scoped VMEM
    # limit when we'd exceed v5e's 16 MiB default (v6e/v7x defaults are 32 MiB).
    est_vmem = 2 * tm * (K * x_bytes + N * out_bytes) + K * N * w_bytes + N * 4
    vmem_limit = None
    if est_vmem > 12 * 1024 * 1024:
        vmem_limit = min(int(est_vmem * 3 // 2), 64 * 1024 * 1024)

    out = pl.pallas_call(
        _intermediate_kernel,
        out_shape=jax.ShapeDtypeStruct((M_pad, N), out_dtype),
        grid_spec=pltpu.PrefetchScalarGridSpec(
            num_scalar_prefetch=0,
            grid=(num_m,),
            in_specs=[
                pl.BlockSpec((tm, K), lambda i: (i, 0)),  # x tile (full K)
                pl.BlockSpec((K, N), lambda i: (0, 0)),   # full weight, resident
                pl.BlockSpec((1, N), lambda i: (0, 0)),   # full bias, loaded once
            ],
            out_specs=pl.BlockSpec((tm, N), lambda i: (i, 0)),
        ),
        compiler_params=pltpu.CompilerParams(
            dimension_semantics=("parallel",),    # shard M blocks across v7x's 2 TCs
            vmem_limit_bytes=vmem_limit,
        ),
        cost_estimate=cost,
    )(x, weight_kn, bias_1n)

    if M_pad != M:
        out = out[:M]
    return out.reshape(B, S, N)


if __name__ == "__main__":
    # Module config (defaults from the PyTorch module), small test shapes.
    emb_dim = 128
    intermediate_size = 512
    batch, seq = 2, 8

    key = jax.random.PRNGKey(0)
    kx, kw, kb = jax.random.split(key, 3)

    hidden_states = jax.random.normal(kx, (batch, seq, emb_dim), dtype=jnp.float32)
    # Deterministic synthetic parameters in torch nn.Linear layout: weight (N, K), bias (N,)
    weight_nk = jax.random.normal(kw, (intermediate_size, emb_dim), dtype=jnp.float32) * 0.02
    bias = jax.random.normal(kb, (intermediate_size,), dtype=jnp.float32) * 0.02

    # One-time parameter prep (cast + transpose out of the per-call path).
    w_kn, b_1n = prepare_params(weight_nk, bias)

    out = mobilebert_intermediate(hidden_states, w_kn, b_1n)
    out = jax.block_until_ready(out)

    # Reference check (plain JAX, f32).  Tolerance relaxed for the bf16 matmul operands.
    ref = jnp.maximum(jnp.einsum("bsk,nk->bsn", hidden_states, weight_nk) + bias, 0.0)
    assert out.shape == (batch, seq, intermediate_size)
    out_f32 = out.astype(jnp.float32)
    max_err = jnp.max(jnp.abs(out_f32 - ref))
    assert jnp.allclose(out_f32, ref, atol=2e-2, rtol=2e-2), f"max abs err {max_err}"

    print("KERNEL_OK")
</pallas_src>

<mosaic_0001>
module attributes {stable_mosaic.version = 11 : i64} {
  func.func @_intermediate_kernel(%arg0: i32, %arg1: memref<16x128xf32, #tpu.memory_space<vmem>>, %arg2: memref<128x512xbf16, #tpu.memory_space<vmem>>, %arg3: memref<1x512xf32, #tpu.memory_space<vmem>>, %arg4: memref<16x512xf32, #tpu.memory_space<vmem>>) attributes {dimension_semantics = [#tpu.dimension_semantics<parallel>], iteration_bounds = array<i64: 1>, scalar_prefetch = 0 : i64, scratch_operands = 0 : i64, tpu.core_type = #tpu.core_type<tc>, window_params = [{transform_indices = @transform_0, window_bounds = array<i64: 16, 128>}, {pipeline_mode = #tpu.pipeline_mode<synchronous>, transform_indices = @transform_1, window_bounds = array<i64: 128, 512>}, {pipeline_mode = #tpu.pipeline_mode<synchronous>, transform_indices = @transform_2, window_bounds = array<i64: 1, 512>}, {transform_indices = @transform_3, window_bounds = array<i64: 16, 512>}]} {
    %c0 = arith.constant 0 : index
    %c0_0 = arith.constant 0 : index
    %0 = vector.load %arg1[%c0, %c0_0] : memref<16x128xf32, #tpu.memory_space<vmem>>, vector<16x128xf32>
    %1 = arith.truncf %0 : vector<16x128xf32> to vector<16x128xbf16>
    %c0_1 = arith.constant 0 : index
    %c0_2 = arith.constant 0 : index
    %2 = vector.load %arg2[%c0_1, %c0_2] : memref<128x512xbf16, #tpu.memory_space<vmem>>, vector<128x512xbf16>
    %cst = arith.constant dense<0.000000e+00> : vector<16x512xf32>
    %3 = tpu.matmul %1, %2, %cst {dimension_numbers = #tpu.dot_dimension_numbers<[1], [0], [0], [1], [0, 0, 1, 1], [], []>} : vector<16x128xbf16>, vector<128x512xbf16>, vector<16x512xf32> -> vector<16x512xf32>
    %c0_3 = arith.constant 0 : index
    %c0_4 = arith.constant 0 : index
    %4 = vector.load %arg3[%c0_3, %c0_4] : memref<1x512xf32, #tpu.memory_space<vmem>>, vector<1x512xf32>
    %5 = vector.broadcast %4 : vector<1x512xf32> to vector<16x512xf32>
    %6 = arith.addf %3, %5 : vector<16x512xf32>
    %cst_5 = arith.constant 0.000000e+00 : f32
    %7 = vector.broadcast %cst_5 : f32 to vector<16x512xf32>
    %8 = arith.maximumf %6, %7 : vector<16x512xf32>
    %c0_6 = arith.constant 0 : index
    %c0_7 = arith.constant 0 : index
    %9 = vector.load %arg4[%c0_6, %c0_7] : memref<16x512xf32, #tpu.memory_space<vmem>>, vector<16x512xf32>
    tpu.vector_store %arg4[%c0_6, %c0_7], %8 {strides = array<i32>} : memref<16x512xf32, #tpu.memory_space<vmem>>, vector<16x512xf32>,
    return
  }
  func.func @transform_0(%arg0: i32) -> (i32, i32) {
    %c0_i32 = arith.constant 0 : i32
    %c0_i32_0 = arith.constant 0 : i32
    return %arg0, %c0_i32 : i32, i32
  }
  func.func @transform_1(%arg0: i32) -> (i32, i32) {
    %c0_i32 = arith.constant 0 : i32
    %c0_i32_0 = arith.constant 0 : i32
    %c0_i32_1 = arith.constant 0 : i32
    return %c0_i32, %c0_i32_0 : i32, i32
  }
  func.func @transform_2(%arg0: i32) -> (i32, i32) {
    %c0_i32 = arith.constant 0 : i32
    %c0_i32_0 = arith.constant 0 : i32
    %c0_i32_1 = arith.constant 0 : i32
    return %c0_i32, %c0_i32_0 : i32, i32
  }
  func.func @transform_3(%arg0: i32) -> (i32, i32) {
    %c0_i32 = arith.constant 0 : i32
    %c0_i32_0 = arith.constant 0 : i32
    return %arg0, %c0_i32 : i32, i32
  }
}

</mosaic_0001>

<llo_original>
// kernel: tpu_custom_call.1
$region0: #{tpu_custom_call.1}
  #allocation0 [shape = 'u32[]', space=smem, size = 0x4, offset = 0x4, fixed_abs, tag = 'smem constant byte address 0x4 - core index']
  #allocation1 [shape = 'u32[144,128]{1,0:T(1,128)}', space=vmem, size = 0x12000, scoped, tag = 'internal scratch']
  %s0 = inlined_call_operand.hbm [shape: f32[16,128], index: 0, kind: input, shape index: {}]
  %s1 = inlined_call_operand.hbm [shape: bf16[128,512], index: 1, kind: input, shape index: {}]
  %s2 = inlined_call_operand.vmem [shape: f32[1,512], index: 2, kind: input, shape index: {}]
  %s3 = inlined_call_operand.hbm [shape: f32[16,512], index: 3, kind: output, shape index: {}]
  %s4 = sld [smem:[#allocation0]]
  $region30: #{tpu_custom_call.1} parent=0
    _
  %s6 = ssub.s32 1, %s4
  %s7 = scalar_select 0, %s6, %s4
  $region1: #{tpu_custom_call.1} parent=0
    #allocation2 [shape = 'u8[8192]{0}', space=vmem, size = 0x2000, scoped, tag = 'input window, operand 0, single buffered']
    #allocation3 [shape = 's32[1]{0}', space=sflag, size = 0x4, scoped, tag = 'scoped memory for tpu_custom_call.1']
    #allocation4 [shape = 's32[1]{0}', space=sflag, size = 0x4, scoped, tag = 'scoped memory for tpu_custom_call.1']
    #allocation5 [shape = 'u8[131072]{0}', space=vmem, size = 0x20000, scoped, tag = 'input window, operand 1, single buffered']
    #allocation6 [shape = 's32[1]{0}', space=sflag, size = 0x4, scoped, tag = 'scoped memory for tpu_custom_call.1']
    #allocation7 [shape = 'u8[32768]{0}', space=vmem, size = 0x8000, scoped, tag = 'output window, operand 0, single buffered']
    %8 = vsyncpa [#allocation3], 0
    %9 = vsyncpa [#allocation6], 0
    %10 = vsyncpa [#allocation4], 0
    // Predicated region
    $region2: #{tpu_custom_call.1} parent=1 // pred_check
      _
    $region3: #{tpu_custom_call.1} parent=1 // pred_check_branch
      %12 = sbr.rel (0) target = $region5
    $region4: #{tpu_custom_call.1} parent=1 // pred_region
      %s14 = ssub.s32 256, 256
      %15 = vsyncadd [#allocation3], %s14
      %s16 = sshll.u32 [#allocation2], 4
      %s17 = int_to_ptr.vmem [resolvable:$true] %s16
      %22 = dma.hbm_to_vmem [thread:$0]  %s0, 256, %s17, [#allocation3], 128, 128, 8
    $region5: #{tpu_custom_call.1} parent=1 // pred_fallthru
      _
    // Predicated region
    $region6: #{tpu_custom_call.1} parent=1 // pred_check
      _
    $region7: #{tpu_custom_call.1} parent=1 // pred_check_branch
      %24 = sbr.rel (0) target = $region9
    $region8: #{tpu_custom_call.1} parent=1 // pred_region
      %s26 = ssub.s32 4096, 4096
      %27 = vsyncadd [#allocation6], %s26
      %s28 = sshll.u32 [#allocation5], 4
      %s29 = int_to_ptr.vmem [resolvable:$true] %s28
      %34 = dma.hbm_to_vmem [thread:$0]  %s1, 4096, %s29, [#allocation6], 256, 256, 16
    $region9: #{tpu_custom_call.1} parent=1 // pred_fallthru
      _
    // Predicated region
    $region10: #{tpu_custom_call.1} parent=1 // pred_check
      _
    $region11: #{tpu_custom_call.1} parent=1 // pred_check_branch
      %36 = sbr.rel (0) target = $region13
    $region12: #{tpu_custom_call.1} parent=1 // pred_region
      _
    $region13: #{tpu_custom_call.1} parent=1 // pred_fallthru
      _
    // Predicated region
    $region14: #{tpu_custom_call.1} parent=1 // pred_check
      _
    $region15: #{tpu_custom_call.1} parent=1 // pred_check_branch
      %38 = sbr.rel (0) target = $region17
    $region16: #{tpu_custom_call.1} parent=1 // pred_region
      %39 = dma.done [#allocation3], 256
    $region17: #{tpu_custom_call.1} parent=1 // pred_fallthru
      _
    // Predicated region
    $region18: #{tpu_custom_call.1} parent=1 // pred_check
      _
    $region19: #{tpu_custom_call.1} parent=1 // pred_check_branch
      %41 = sbr.rel (0) target = $region21
    $region20: #{tpu_custom_call.1} parent=1 // pred_region
      %42 = dma.done [#allocation6], 4096
    $region21: #{tpu_custom_call.1} parent=1 // pred_fallthru
      _
    %v44 = vld [vmem:[#allocation2] sm:$0xff]
    %v45 = vld [vmem:[#allocation2 + $0x8] sm:$0xff]
    %v46 = vpack.c.bf16 %v45, %v44
    %v47 = vld [vmem:[#allocation5] sm:$0xff]
    %v48 = vld [vmem:[#allocation5 + $0x8] sm:$0xff]
    %v49 = vld [vmem:[#allocation5 + $0x10] sm:$0xff]
    %v50 = vld [vmem:[#allocation5 + $0x18] sm:$0xff]
    %v51 = vld [vmem:[#allocation5 + $0x20] sm:$0xff]
    %v52 = vld [vmem:[#allocation5 + $0x28] sm:$0xff]
    %v53 = vld [vmem:[#allocation5 + $0x30] sm:$0xff]
    %v54 = vld [vmem:[#allocation5 + $0x38] sm:$0xff]
    %v55 = vld [vmem:[#allocation5 + $0x40] sm:$0xff]
    %v56 = vld [vmem:[#allocation5 + $0x48] sm:$0xff]
    %v57 = vld [vmem:[#allocation5 + $0x50] sm:$0xff]
    %v58 = vld [vmem:[#allocation5 + $0x58] sm:$0xff]
    %v59 = vld [vmem:[#allocation5 + $0x60] sm:$0xff]
    %v60 = vld [vmem:[#allocation5 + $0x68] sm:$0xff]
    %v61 = vld [vmem:[#allocation5 + $0x70] sm:$0xff]
    %v62 = vld [vmem:[#allocation5 + $0x78] sm:$0xff]
    %v63 = vld [vmem:[#allocation5 + $0x80] sm:$0xff]
    %v64 = vld [vmem:[#allocation5 + $0x88] sm:$0xff]
    %v65 = vld [vmem:[#allocation5 + $0x90] sm:$0xff]
    %v66 = vld [vmem:[#allocation5 + $0x98] sm:$0xff]
    %v67 = vld [vmem:[#allocation5 + $0xa0] sm:$0xff]
    %v68 = vld [vmem:[#allocation5 + $0xa8] sm:$0xff]
    %v69 = vld [vmem:[#allocation5 + $0xb0] sm:$0xff]
    %v70 = vld [vmem:[#allocation5 + $0xb8] sm:$0xff]
    %v71 = vld [vmem:[#allocation5 + $0xc0] sm:$0xff]
    %v72 = vld [vmem:[#allocation5 + $0xc8] sm:$0xff]
    %v73 = vld [vmem:[#allocation5 + $0xd0] sm:$0xff]
    %v74 = vld [vmem:[#allocation5 + $0xd8] sm:$0xff]
    %v75 = vld [vmem:[#allocation5 + $0xe0] sm:$0xff]
    %v76 = vld [vmem:[#allocation5 + $0xe8] sm:$0xff]
    %v77 = vld [vmem:[#allocation5 + $0xf0] sm:$0xff]
    %v78 = vld [vmem:[#allocation5 + $0xf8] sm:$0xff]
    %v79 = vld [vmem:[%s2] sm:$0xf]
    %v81 = vlaneseq
    %v82 = vshrl.u32 %v81, 7
    %v83 = vsub.s32 0, %v82
    %v84 = vrot.slane %v79, %v83
    %v85 = vlaneseq
    %v86 = vshrl.u32 %v85, 7
    %v87 = vsub.s32 1, %v86
    %v88 = vrot.slane %v79, %v87
    %v89 = vlaneseq
    %v90 = vshrl.u32 %v89, 7
    %v91 = vsub.s32 2, %v90
    %v92 = vrot.slane %v79, %v91
    %v93 = vlaneseq
    %v94 = vshrl.u32 %v93, 7
    %v95 = vsub.s32 3, %v94
    %v96 = vrot.slane %v79, %v95
    %v133 = vunpack.c.l.b16 %v47
    %v134 = vunpack.c.h.b16 %v47
    %v135 = vunpack.c.l.b16 %v48
    %v136 = vunpack.c.h.b16 %v48
    %v137 = vunpack.c.l.b16 %v49
    %v138 = vunpack.c.h.b16 %v49
    %v139 = vunpack.c.l.b16 %v50
    %v140 = vunpack.c.h.b16 %v50
    %v141 = vunpack.c.l.b16 %v51
    %v142 = vunpack.c.h.b16 %v51
    %v143 = vunpack.c.l.b16 %v52
    %v144 = vunpack.c.h.b16 %v52
    %v145 = vunpack.c.l.b16 %v53
    %v146 = vunpack.c.h.b16 %v53
    %v147 = vunpack.c.l.b16 %v54
    %v148 = vunpack.c.h.b16 %v54
    %v149 = vunpack.c.l.b16 %v55
    %v150 = vunpack.c.h.b16 %v55
    %v151 = vunpack.c.l.b16 %v56
    %v152 = vunpack.c.h.b16 %v56
    %v153 = vunpack.c.l.b16 %v57
    %v154 = vunpack.c.h.b16 %v57
    %v155 = vunpack.c.l.b16 %v58
    %v156 = vunpack.c.h.b16 %v58
    %v157 = vunpack.c.l.b16 %v59
    %v158 = vunpack.c.h.b16 %v59
    %v159 = vunpack.c.l.b16 %v60
    %v160 = vunpack.c.h.b16 %v60
    %v161 = vunpack.c.l.b16 %v61
    %v162 = vunpack.c.h.b16 %v61
    %v163 = vunpack.c.l.b16 %v62
    %v164 = vunpack.c.h.b16 %v62
    %v165 = vunpack.c.l.b16 %v63
    %v166 = vunpack.c.h.b16 %v63
    %v167 = vunpack.c.l.b16 %v64
    %v168 = vunpack.c.h.b16 %v64
    %v169 = vunpack.c.l.b16 %v65
    %v170 = vunpack.c.h.b16 %v65
    %v171 = vunpack.c.l.b16 %v66
    %v172 = vunpack.c.h.b16 %v66
    %v173 = vunpack.c.l.b16 %v67
    %v174 = vunpack.c.h.b16 %v67
    %v175 = vunpack.c.l.b16 %v68
    %v176 = vunpack.c.h.b16 %v68
    %v177 = vunpack.c.l.b16 %v69
    %v178 = vunpack.c.h.b16 %v69
    %v179 = vunpack.c.l.b16 %v70
    %v180 = vunpack.c.h.b16 %v70
    %v181 = vunpack.c.l.b16 %v71
    %v182 = vunpack.c.h.b16 %v71
    %v183 = vunpack.c.l.b16 %v72
    %v184 = vunpack.c.h.b16 %v72
    %v185 = vunpack.c.l.b16 %v73
    %v186 = vunpack.c.h.b16 %v73
    %v187 = vunpack.c.l.b16 %v74
    %v188 = vunpack.c.h.b16 %v74
    %v189 = vunpack.c.l.b16 %v75
    %v190 = vunpack.c.h.b16 %v75
    %v191 = vunpack.c.l.b16 %v76
    %v192 = vunpack.c.h.b16 %v76
    %v193 = vunpack.c.l.b16 %v77
    %v194 = vunpack.c.h.b16 %v77
    %v195 = vunpack.c.l.b16 %v78
    %v196 = vunpack.c.h.b16 %v78
    %v197 = vpack.c.b16 %v137, %v133
    %v198 = vpack.c.b16 %v138, %v134
    %v199 = vpack.c.b16 %v139, %v135
    %v200 = vpack.c.b16 %v140, %v136
    %v201 = vpack.c.b16 %v145, %v141
    %v202 = vpack.c.b16 %v146, %v142
    %v203 = vpack.c.b16 %v147, %v143
    %v204 = vpack.c.b16 %v148, %v144
    %v205 = vpack.c.b16 %v153, %v149
    %v206 = vpack.c.b16 %v154, %v150
    %v207 = vpack.c.b16 %v155, %v151
    %v208 = vpack.c.b16 %v156, %v152
    %v209 = vpack.c.b16 %v161, %v157
    %v210 = vpack.c.b16 %v162, %v158
    %v211 = vpack.c.b16 %v163, %v159
    %v212 = vpack.c.b16 %v164, %v160
    %v213 = vpack.c.b16 %v169, %v165
    %v214 = vpack.c.b16 %v170, %v166
    %v215 = vpack.c.b16 %v171, %v167
    %v216 = vpack.c.b16 %v172, %v168
    %v217 = vpack.c.b16 %v177, %v173
    %v218 = vpack.c.b16 %v178, %v174
    %v219 = vpack.c.b16 %v179, %v175
    %v220 = vpack.c.b16 %v180, %v176
    %v221 = vpack.c.b16 %v185, %v181
    %v222 = vpack.c.b16 %v186, %v182
    %v223 = vpack.c.b16 %v187, %v183
    %v224 = vpack.c.b16 %v188, %v184
    %v225 = vpack.c.b16 %v193, %v189
    %v226 = vpack.c.b16 %v194, %v190
    %v227 = vpack.c.b16 %v195, %v191
    %v228 = vpack.c.b16 %v196, %v192
    %261 = vmatprep.subr.bf16.mxu0 %v198
    %262 = vmatpush1.bf16.msra.mxu0 %v197
    %263 = vmatprep.subr.bf16.mxu0 %v202
    %264 = vmatpush1.bf16.msra.mxu0 %v201
    %265 = vmatprep.subr.bf16.mxu0 %v206
    %266 = vmatpush1.bf16.msra.mxu0 %v205
    %267 = vmatprep.subr.bf16.mxu0 %v210
    %268 = vmatpush1.bf16.msra.mxu0 %v209
    %269 = vmatprep.subr.bf16.mxu0 %v214
    %270 = vmatpush1.bf16.msra.mxu0 %v213
    %271 = vmatprep.subr.bf16.mxu0 %v218
    %272 = vmatpush1.bf16.msra.mxu0 %v217
    %273 = vmatprep.subr.bf16.mxu0 %v222
    %274 = vmatpush1.bf16.msra.mxu0 %v221
    %275 = vmatprep.subr.bf16.mxu0 %v226
    %276 = vmatpush1.bf16.msra.mxu0 %v225
    %277 = vmatprep.subr.bf16.mxu0 0
    %278 = vmatpush1.bf16.msra.mxu0 0
    %279 = vmatprep.subr.bf16.mxu0 0
    %280 = vmatpush1.bf16.msra.mxu0 0
    %281 = vmatprep.subr.bf16.mxu0 0
    %282 = vmatpush1.bf16.msra.mxu0 0
    %283 = vmatprep.subr.bf16.mxu0 0
    %284 = vmatpush1.bf16.msra.mxu0 0
    %285 = vmatprep.subr.bf16.mxu0 0
    %286 = vmatpush1.bf16.msra.mxu0 0
    %287 = vmatprep.subr.bf16.mxu0 0
    %288 = vmatpush1.bf16.msra.mxu0 0
    %289 = vmatprep.subr.bf16.mxu0 0
    %290 = vmatpush1.bf16.msra.mxu0 0
    %291 = vmatprep.subr.bf16.mxu0 0
    %292 = vmatpush1.bf16.msra.mxu0 0
    %293 = vmatprep.mubr.bf16.mxu0 0
    %294 = vmatmul.mubr.bf16.gmra.mrb[0].mxu0 %v46
    %v295 = vpop.f32.mrb[0].mxu0
    %v296 = vadd.f32 %v84, %v295
    %v297 = vpop.f32.mrb[0].mxu0
    %v298 = vadd.f32 %v88, %v297
    %v299 = vpop.f32.mrb[0].mxu0
    %v300 = vadd.f32 %v84, %v299
    %v301 = vpop.f32.mrb[0].mxu0
    %v302 = vadd.f32 %v88, %v301
    %303 = vdwg.mxu0
    %304 = vmatprep.subr.bf16.mxu0 %v200
    %305 = vmatpush1.bf16.msra.mxu0 %v199
    %306 = vmatprep.subr.bf16.mxu0 %v204
    %307 = vmatpush1.bf16.msra.mxu0 %v203
    %308 = vmatprep.subr.bf16.mxu0 %v208
    %309 = vmatpush1.bf16.msra.mxu0 %v207
    %310 = vmatprep.subr.bf16.mxu0 %v212
    %311 = vmatpush1.bf16.msra.mxu0 %v211
    %312 = vmatprep.subr.bf16.mxu0 %v216
    %313 = vmatpush1.bf16.msra.mxu0 %v215
    %314 = vmatprep.subr.bf16.mxu0 %v220
    %315 = vmatpush1.bf16.msra.mxu0 %v219
    %316 = vmatprep.subr.bf16.mxu0 %v224
    %317 = vmatpush1.bf16.msra.mxu0 %v223
    %318 = vmatprep.subr.bf16.mxu0 %v228
    %319 = vmatpush1.bf16.msra.mxu0 %v227
    %320 = vmatprep.subr.bf16.mxu0 0
    %321 = vmatpush1.bf16.msra.mxu0 0
    %322 = vmatprep.subr.bf16.mxu0 0
    %323 = vmatpush1.bf16.msra.mxu0 0
    %324 = vmatprep.subr.bf16.mxu0 0
    %325 = vmatpush1.bf16.msra.mxu0 0
    %326 = vmatprep.subr.bf16.mxu0 0
    %327 = vmatpush1.bf16.msra.mxu0 0
    %328 = vmatprep.subr.bf16.mxu0 0
    %329 = vmatpush1.bf16.msra.mxu0 0
    %330 = vmatprep.subr.bf16.mxu0 0
    %331 = vmatpush1.bf16.msra.mxu0 0
    %332 = vmatprep.subr.bf16.mxu0 0
    %333 = vmatpush1.bf16.msra.mxu0 0
    %334 = vmatprep.subr.bf16.mxu0 0
    %335 = vmatpush1.bf16.msra.mxu0 0
    %336 = vmatprep.mubr.bf16.mxu0 0
    %337 = vmatmul.mubr.bf16.gmra.mrb[0].mxu0 %v46
    %v338 = vpop.f32.mrb[0].mxu0
    %v339 = vadd.f32 %v92, %v338
    %v340 = vpop.f32.mrb[0].mxu0
    %v341 = vadd.f32 %v96, %v340
    %v342 = vpop.f32.mrb[0].mxu0
    %v343 = vadd.f32 %v92, %v342
    %v344 = vpop.f32.mrb[0].mxu0
    %v345 = vadd.f32 %v96, %v344
    %346 = vdwg.mxu0
    %v347 = vmax.f32 %v296, 0.0
    %v348 = vmax.f32 %v298, 0.0
    %v349 = vmax.f32 %v339, 0.0
    %v350 = vmax.f32 %v341, 0.0
    %v351 = vmax.f32 %v300, 0.0
    %v352 = vmax.f32 %v302, 0.0
    %v353 = vmax.f32 %v343, 0.0
    %v354 = vmax.f32 %v345, 0.0
    %355 = vst [vmem:[#allocation7] sm:$0xff] %v347
    %356 = vst [vmem:[#allocation7 + $0x8] sm:$0xff] %v348
    %357 = vst [vmem:[#allocation7 + $0x10] sm:$0xff] %v349
    %358 = vst [vmem:[#allocation7 + $0x18] sm:$0xff] %v350
    %359 = vst [vmem:[#allocation7 + $0x20] sm:$0xff] %v351
    %360 = vst [vmem:[#allocation7 + $0x28] sm:$0xff] %v352
    %361 = vst [vmem:[#allocation7 + $0x30] sm:$0xff] %v353
    %362 = vst [vmem:[#allocation7 + $0x38] sm:$0xff] %v354
    // Predicated region
    $region22: #{tpu_custom_call.1} parent=1 // pred_check
      _
    $region23: #{tpu_custom_call.1} parent=1 // pred_check_branch
      %364 = sbr.rel (0) target = $region25
    $region24: #{tpu_custom_call.1} parent=1 // pred_region
      %s366 = ssub.s32 1024, 1024
      %367 = vsyncadd [#allocation4], %s366
      %s368 = sshll.u32 [#allocation7], 4
      %s369 = int_to_ptr.vmem [resolvable:$true] %s368
      %374 = dma.vmem_to_hbm [thread:$0]  %s369, 1024, %s3, [#allocation4], 512, 512, 32
    $region25: #{tpu_custom_call.1} parent=1 // pred_fallthru
      _
    // Predicated region
    $region26: #{tpu_custom_call.1} parent=1 // pred_check
      _
    $region27: #{tpu_custom_call.1} parent=1 // pred_check_branch
      %376 = sbr.rel (0) target = $region29
    $region28: #{tpu_custom_call.1} parent=1 // pred_region
      %377 = dma.done [#allocation4], 1024
    $region29: #{tpu_custom_call.1} parent=1 // pred_fallthru
      _
    %378 = vsyncpa [#allocation3], 1
    %379 = vsyncpa [#allocation6], 1
    %380 = vsyncpa [#allocation4], 1

</llo_original>
